<compile_context>
chip_gen: v5e
topology: v5e:2x2
jax: 0.10.0
libtpu: 0.0.40
codegen_flags: <defaults>
</compile_context>

<pallas_src>
import jax
import jax.numpy as jnp
from jax.experimental import pallas as pl
from jax.experimental.pallas import tpu as pltpu

H1_DIM = 512
H2_DIM = 1024
LEAKY_SLOPE = 0.01
_VMEM_LIMIT_BYTES = 48 * 1024 * 1024  # fits v7x's 64 MiB physical VMEM with headroom


def _round_up(x, m):
    return ((x + m - 1) // m) * m


def _choose_row_tile(n_p, budget_bytes=36 << 20):
    """Largest row tile (divides n_p, multiple of 16) whose per-call footprint fits budget."""
    resident = (n_p * H1_DIM + n_p * 128) * 2 \
        + (H1_DIM * H2_DIM + H2_DIM * 128 + 128 * H1_DIM) * 2 + (1 << 20)
    for cand in (256, 128, 64, 32, 16):
        if cand > n_p or n_p % cand != 0:
            continue
        need = 2 * cand * n_p * 2 + 4 * cand * H2_DIM * 4 + resident
        if need <= budget_bytes:
            return cand
    return 16


# --------------------------------------------------------------------------------------
# Kernels (one row-tile of A per grid step; everything else VMEM-resident)
# --------------------------------------------------------------------------------------
def _gcn_expand_kernel(a_ref, x_ref, w_ref, b_ref, o_ref):
    # Expanding GraphConv (out > in): aggregate first, then transform.
    #   H_tile = leaky_relu( (A_tile @ X) @ W + b )
    s = jnp.dot(a_ref[...], x_ref[...], preferred_element_type=jnp.float32)
    h = jnp.dot(s.astype(jnp.bfloat16), w_ref[...], preferred_element_type=jnp.float32)
    h = h + b_ref[...]
    h = jnp.where(h > 0, h, LEAKY_SLOPE * h)
    o_ref[...] = h.astype(o_ref.dtype)


def _gcn_expand_plus_w3_kernel(a_ref, h1_ref, w2_ref, b2_ref, w3_ref, o_ref):
    # Layer 2 (aggregate-first) + leaky_relu, fused with layer 3's feature transform
    # (H2 @ W3) so the (N, 1024) H2 never round-trips through HBM.
    s = jnp.dot(a_ref[...], h1_ref[...], preferred_element_type=jnp.float32)
    h = jnp.dot(s.astype(jnp.bfloat16), w2_ref[...], preferred_element_type=jnp.float32)
    h = h + b2_ref[...]
    h = jnp.where(h > 0, h, LEAKY_SLOPE * h)
    xw3 = jnp.dot(h.astype(jnp.bfloat16), w3_ref[...], preferred_element_type=jnp.float32)
    o_ref[...] = xw3.astype(o_ref.dtype)


def _gcn_aggregate_kernel(a_ref, xw_ref, b_ref, o_ref):
    # Layer 3 aggregation: H3_tile = A_tile @ (H2 @ W3) + b3
    h = jnp.dot(a_ref[...], xw_ref[...], preferred_element_type=jnp.float32)
    o_ref[...] = (h + b_ref[...]).astype(o_ref.dtype)


# --------------------------------------------------------------------------------------
# Wrapper
# --------------------------------------------------------------------------------------
def _row_tiled_call(kernel, a, resident_args, out_dim, out_dtype, tm,
                    flops, bytes_accessed):
    n_p = a.shape[0]
    grid = (n_p // tm,)
    # Resident operands: full-array block, constant index map, single buffer.
    resident_specs = [
        pl.BlockSpec(arr.shape, lambda i: (0, 0), pipeline_mode=pl.Buffered(1))
        for arr in resident_args
    ]
    return pl.pallas_call(
        kernel,
        out_shape=jax.ShapeDtypeStruct((n_p, out_dim), out_dtype),
        grid_spec=pltpu.PrefetchScalarGridSpec(
            num_scalar_prefetch=0,
            grid=grid,
            in_specs=[pl.BlockSpec((tm, n_p), lambda i: (i, 0))] + resident_specs,
            out_specs=pl.BlockSpec((tm, out_dim), lambda i: (i, 0)),
        ),
        compiler_params=pltpu.CompilerParams(
            dimension_semantics=("parallel",),
            vmem_limit_bytes=_VMEM_LIMIT_BYTES,
        ),
        cost_estimate=pl.CostEstimate(
            flops=flops, transcendentals=0, bytes_accessed=bytes_accessed),
    )(a, *resident_args)


def prepare_params(params, num_feature):
    """One-time prep: pad feature dims to 128-lane multiples, cast weights to bf16."""
    (w1, b1), (w2, b2), (w3, b3) = params
    f_out = w3.shape[1]
    f_in_p = _round_up(max(num_feature, 128), 128)
    f_out_p = _round_up(max(f_out, 128), 128)
    return {
        "f_in_p": f_in_p,
        "f_out": f_out,
        "f_out_p": f_out_p,
        "w1": jnp.pad(w1, ((0, f_in_p - w1.shape[0]), (0, 0))).astype(jnp.bfloat16),
        "b1": b1.astype(jnp.float32),
        "w2": w2.astype(jnp.bfloat16),
        "b2": b2.astype(jnp.float32),
        "w3": jnp.pad(w3, ((0, 0), (0, f_out_p - f_out))).astype(jnp.bfloat16),
        "b3": jnp.pad(b3, ((0, 0), (0, f_out_p - f_out))).astype(jnp.float32),
    }


def awa2conv_forward(a_hat, x, prep):
    """conv1 -> leaky_relu -> conv2 -> leaky_relu -> conv3 (bf16 MXU, f32 accumulation)."""
    n, f_in = x.shape
    f_in_p, f_out, f_out_p = prep["f_in_p"], prep["f_out"], prep["f_out_p"]

    if n <= 256:
        n_p = _round_up(n, 8)
        tm = n_p                       # single row tile; everything tiny
    else:
        n_p = _round_up(n, 256)
        tm = _choose_row_tile(n_p)     # keep per-call VMEM footprint under budget

    # Zero padding is exact: padded A rows/cols are zero -> padded rows never
    # contaminate real rows; padded output rows/cols are sliced off below.
    a_p = jnp.pad(a_hat, ((0, n_p - n), (0, n_p - n))).astype(jnp.bfloat16)
    x_p = jnp.pad(x, ((0, n_p - n), (0, f_in_p - f_in))).astype(jnp.bfloat16)

    # ---- layer 1: F_in -> 512 ----
    h1 = _row_tiled_call(
        _gcn_expand_kernel, a_p, [x_p, prep["w1"], prep["b1"]],
        out_dim=H1_DIM, out_dtype=jnp.bfloat16, tm=tm,
        flops=2 * n_p * n_p * f_in_p + 2 * n_p * f_in_p * H1_DIM,
        bytes_accessed=2 * (n_p * n_p + n_p * f_in_p + f_in_p * H1_DIM + n_p * H1_DIM)
        + 4 * H1_DIM)

    # ---- layer 2: 512 -> 1024, fused with layer-3 transform (H2 @ W3) ----
    xw3 = _row_tiled_call(
        _gcn_expand_plus_w3_kernel, a_p,
        [h1, prep["w2"], prep["b2"], prep["w3"]],
        out_dim=f_out_p, out_dtype=jnp.bfloat16, tm=tm,
        flops=2 * n_p * n_p * H1_DIM + 2 * n_p * H1_DIM * H2_DIM
        + 2 * n_p * H2_DIM * f_out_p,
        bytes_accessed=2 * (n_p * n_p + n_p * H1_DIM + H1_DIM * H2_DIM
                            + H2_DIM * f_out_p + n_p * f_out_p) + 4 * H2_DIM)

    # ---- layer 3 aggregation: A @ (H2 @ W3) + b3 ----
    h3 = _row_tiled_call(
        _gcn_aggregate_kernel, a_p, [xw3, prep["b3"]],
        out_dim=f_out_p, out_dtype=jnp.float32, tm=tm,
        flops=2 * n_p * n_p * f_out_p,
        bytes_accessed=2 * (n_p * n_p + n_p * f_out_p) + 4 * (f_out_p + n_p * f_out_p))

    # TODO(synk): `g.ndata['h'] = h` (storing features back onto the DGL graph object)
    # has no Pallas/JAX equivalent; the features are simply returned.
    return h3[:n, :f_out]


# --------------------------------------------------------------------------------------
# Deterministic example setup
# --------------------------------------------------------------------------------------
def init_params(key, num_feature, num_output):
    """DGL GraphConv-shaped params (xavier-ish weights, zero bias)."""
    dims = [(num_feature, H1_DIM), (H1_DIM, H2_DIM), (H2_DIM, num_output)]
    params = []
    for i, (fin, fout) in enumerate(dims):
        k = jax.random.fold_in(key, i)
        scale = jnp.sqrt(6.0 / (fin + fout))
        w = jax.random.uniform(k, (fin, fout), jnp.float32, -scale, scale)
        b = jnp.zeros((1, fout), jnp.float32)
        params.append((w, b))
    return params


def build_normalized_adjacency(n):
    """Deterministic small graph: ring + self loops, symmetric normalization."""
    a = jnp.eye(n, dtype=jnp.float32)
    idx = jnp.arange(n)
    a = a.at[idx, (idx + 1) % n].set(1.0)
    a = a.at[(idx + 1) % n, idx].set(1.0)
    deg = jnp.sum(a, axis=1)
    d_inv_sqrt = 1.0 / jnp.sqrt(deg)
    return a * d_inv_sqrt[:, None] * d_inv_sqrt[None, :]


def _reference(a, x, params):
    (w1, b1), (w2, b2), (w3, b3) = params
    h = a @ x @ w1 + b1
    h = jnp.where(h > 0, h, LEAKY_SLOPE * h)
    h = a @ h @ w2 + b2
    h = jnp.where(h > 0, h, LEAKY_SLOPE * h)
    return a @ (h @ w3) + b3


if __name__ == "__main__":
    num_nodes = 16
    num_feature = 32
    num_output = 16

    key = jax.random.PRNGKey(0)
    k_x, k_p = jax.random.split(key)

    x = jax.random.normal(k_x, (num_nodes, num_feature), dtype=jnp.float32)
    a_hat = build_normalized_adjacency(num_nodes)
    params = init_params(k_p, num_feature, num_output)
    prep = prepare_params(params, num_feature)

    out = awa2conv_forward(a_hat, x, prep)
    out = jax.block_until_ready(out)
    assert out.shape == (num_nodes, num_output), out.shape
    assert bool(jnp.all(jnp.isfinite(out)))

    # Loose check vs f32 reference (bf16 MXU operands => ~1e-2 relative error expected).
    ref = _reference(a_hat, x, params)
    err = float(jnp.max(jnp.abs(out - ref)))
    scale = float(jnp.max(jnp.abs(ref))) + 1e-6
    assert err <= 1e-2 + 5e-2 * scale, (err, scale)

    print("KERNEL_OK")
</pallas_src>

<mosaic_0001>
module attributes {stable_mosaic.version = 11 : i64} {
  func.func @_gcn_expand_kernel(%arg0: i32, %arg1: memref<16x16xbf16, #tpu.memory_space<vmem>>, %arg2: memref<16x128xbf16, #tpu.memory_space<vmem>>, %arg3: memref<128x512xbf16, #tpu.memory_space<vmem>>, %arg4: memref<1x512xf32, #tpu.memory_space<vmem>>, %arg5: memref<16x512xbf16, #tpu.memory_space<vmem>>) attributes {dimension_semantics = [#tpu.dimension_semantics<parallel>], iteration_bounds = array<i64: 1>, scalar_prefetch = 0 : i64, scratch_operands = 0 : i64, tpu.core_type = #tpu.core_type<tc>, window_params = [{transform_indices = @transform_0, window_bounds = array<i64: 16, 16>}, {pipeline_mode = #tpu.pipeline_mode<synchronous>, transform_indices = @transform_1, window_bounds = array<i64: 16, 128>}, {pipeline_mode = #tpu.pipeline_mode<synchronous>, transform_indices = @transform_2, window_bounds = array<i64: 128, 512>}, {pipeline_mode = #tpu.pipeline_mode<synchronous>, transform_indices = @transform_3, window_bounds = array<i64: 1, 512>}, {transform_indices = @transform_4, window_bounds = array<i64: 16, 512>}]} {
    %c0 = arith.constant 0 : index
    %c0_0 = arith.constant 0 : index
    %0 = vector.load %arg1[%c0, %c0_0] : memref<16x16xbf16, #tpu.memory_space<vmem>>, vector<16x16xbf16>
    %c0_1 = arith.constant 0 : index
    %c0_2 = arith.constant 0 : index
    %1 = vector.load %arg2[%c0_1, %c0_2] : memref<16x128xbf16, #tpu.memory_space<vmem>>, vector<16x128xbf16>
    %cst = arith.constant dense<0.000000e+00> : vector<16x128xf32>
    %2 = tpu.matmul %0, %1, %cst {dimension_numbers = #tpu.dot_dimension_numbers<[1], [0], [0], [1], [0, 0, 1, 1], [], []>} : vector<16x16xbf16>, vector<16x128xbf16>, vector<16x128xf32> -> vector<16x128xf32>
    %3 = arith.truncf %2 : vector<16x128xf32> to vector<16x128xbf16>
    %c0_3 = arith.constant 0 : index
    %c0_4 = arith.constant 0 : index
    %4 = vector.load %arg3[%c0_3, %c0_4] : memref<128x512xbf16, #tpu.memory_space<vmem>>, vector<128x512xbf16>
    %cst_5 = arith.constant dense<0.000000e+00> : vector<16x512xf32>
    %5 = tpu.matmul %3, %4, %cst_5 {dimension_numbers = #tpu.dot_dimension_numbers<[1], [0], [0], [1], [0, 0, 1, 1], [], []>} : vector<16x128xbf16>, vector<128x512xbf16>, vector<16x512xf32> -> vector<16x512xf32>
    %c0_6 = arith.constant 0 : index
    %c0_7 = arith.constant 0 : index
    %6 = vector.load %arg4[%c0_6, %c0_7] : memref<1x512xf32, #tpu.memory_space<vmem>>, vector<1x512xf32>
    %7 = vector.broadcast %6 : vector<1x512xf32> to vector<16x512xf32>
    %8 = arith.addf %5, %7 : vector<16x512xf32>
    %cst_8 = arith.constant 0.000000e+00 : f32
    %9 = vector.broadcast %cst_8 : f32 to vector<16x512xf32>
    %10 = arith.cmpf ogt, %8, %9 : vector<16x512xf32>
    %cst_9 = arith.constant 0.00999999977 : f32
    %11 = vector.broadcast %cst_9 : f32 to vector<16x512xf32>
    %12 = arith.mulf %11, %8 : vector<16x512xf32>
    %13 = arith.select %10, %8, %12 : vector<16x512xi1>, vector<16x512xf32>
    %14 = arith.truncf %13 : vector<16x512xf32> to vector<16x512xbf16>
    %c0_10 = arith.constant 0 : index
    %c0_11 = arith.constant 0 : index
    %15 = vector.load %arg5[%c0_10, %c0_11] : memref<16x512xbf16, #tpu.memory_space<vmem>>, vector<16x512xbf16>
    tpu.vector_store %arg5[%c0_10, %c0_11], %14 {strides = array<i32>} : memref<16x512xbf16, #tpu.memory_space<vmem>>, vector<16x512xbf16>,
    return
  }
  func.func @transform_0(%arg0: i32) -> (i32, i32) {
    %c0_i32 = arith.constant 0 : i32
    %c0_i32_0 = arith.constant 0 : i32
    return %arg0, %c0_i32 : i32, i32
  }
  func.func @transform_1(%arg0: i32) -> (i32, i32) {
    %c0_i32 = arith.constant 0 : i32
    %c0_i32_0 = arith.constant 0 : i32
    %c0_i32_1 = arith.constant 0 : i32
    return %c0_i32, %c0_i32_0 : i32, i32
  }
  func.func @transform_2(%arg0: i32) -> (i32, i32) {
    %c0_i32 = arith.constant 0 : i32
    %c0_i32_0 = arith.constant 0 : i32
    %c0_i32_1 = arith.constant 0 : i32
    return %c0_i32, %c0_i32_0 : i32, i32
  }
  func.func @transform_3(%arg0: i32) -> (i32, i32) {
    %c0_i32 = arith.constant 0 : i32
    %c0_i32_0 = arith.constant 0 : i32
    %c0_i32_1 = arith.constant 0 : i32
    return %c0_i32, %c0_i32_0 : i32, i32
  }
  func.func @transform_4(%arg0: i32) -> (i32, i32) {
    %c0_i32 = arith.constant 0 : i32
    %c0_i32_0 = arith.constant 0 : i32
    return %arg0, %c0_i32 : i32, i32
  }
}

</mosaic_0001>

<llo_original>
// kernel: tpu_custom_call.1
$region0: #{tpu_custom_call.1}
  #allocation0 [shape = 'u32[]', space=smem, size = 0x4, offset = 0x4, fixed_abs, tag = 'smem constant byte address 0x4 - core index']
  #allocation1 [shape = 'u32[72,128]{1,0:T(1,128)}', space=vmem, size = 0x9000, scoped, tag = 'internal scratch']
  %s0 = inlined_call_operand.hbm [shape: bf16[16,16], index: 0, kind: input, shape index: {}]
  %s1 = inlined_call_operand.hbm [shape: bf16[16,128], index: 1, kind: input, shape index: {}]
  %s2 = inlined_call_operand.hbm [shape: bf16[128,512], index: 2, kind: input, shape index: {}]
  %s3 = inlined_call_operand.hbm [shape: f32[1,512], index: 3, kind: input, shape index: {}]
  %s4 = inlined_call_operand.hbm [shape: bf16[16,512], index: 4, kind: output, shape index: {}]
  %s5 = sld [smem:[#allocation0]]
  $region42: #{tpu_custom_call.1} parent=0
    _
  %s7 = ssub.s32 1, %s5
  %s8 = scalar_select 0, %s7, %s5
  $region1: #{tpu_custom_call.1} parent=0
    #allocation2 [shape = 'u8[4096]{0}', space=vmem, size = 0x1000, scoped, tag = 'input window, operand 0, single buffered']
    #allocation3 [shape = 's32[1]{0}', space=sflag, size = 0x4, scoped, tag = 'scoped memory for tpu_custom_call.1']
    #allocation4 [shape = 's32[1]{0}', space=sflag, size = 0x4, scoped, tag = 'scoped memory for tpu_custom_call.1']
    #allocation5 [shape = 'u8[4096]{0}', space=vmem, size = 0x1000, scoped, tag = 'input window, operand 1, single buffered']
    #allocation6 [shape = 's32[1]{0}', space=sflag, size = 0x4, scoped, tag = 'scoped memory for tpu_custom_call.1']
    #allocation7 [shape = 'u8[131072]{0}', space=vmem, size = 0x20000, scoped, tag = 'input window, operand 2, single buffered']
    #allocation8 [shape = 'u8[2048]{0}', space=vmem, size = 0x800, scoped, tag = 'input window, operand 3, single buffered']
    #allocation9 [shape = 's32[1]{0}', space=sflag, size = 0x4, scoped, tag = 'scoped memory for tpu_custom_call.1']
    #allocation10 [shape = 'u8[16384]{0}', space=vmem, size = 0x4000, scoped, tag = 'output window, operand 0, single buffered']
    %9 = vsyncpa [#allocation3], 0
    %10 = vsyncpa [#allocation6], 0
    %11 = vsyncpa [#allocation9], 0
    %12 = vsyncpa [#allocation4], 0
    // Predicated region
    $region2: #{tpu_custom_call.1} parent=1 // pred_check
      _
    $region3: #{tpu_custom_call.1} parent=1 // pred_check_branch
      %14 = sbr.rel (0) target = $region5
    $region4: #{tpu_custom_call.1} parent=1 // pred_region
      %16 = vsyncadd [#allocation3], 0
      %s17 = sshll.u32 %s0, 4
      %s18 = int_to_ptr.hbm [resolvable:$true] %s17
      %s19 = sshll.u32 [#allocation2], 4
      %s20 = int_to_ptr.vmem [resolvable:$true] %s19
      %25 = dma.hbm_to_vmem [thread:$0]  %s18, 128, %s20, [#allocation3], 64, 64, 4
    $region5: #{tpu_custom_call.1} parent=1 // pred_fallthru
      _
    // Predicated region
    $region6: #{tpu_custom_call.1} parent=1 // pred_check
      _
    $region7: #{tpu_custom_call.1} parent=1 // pred_check_branch
      %27 = sbr.rel (0) target = $region9
    $region8: #{tpu_custom_call.1} parent=1 // pred_region
      %29 = vsyncadd [#allocation6], 0
      %s30 = sshll.u32 %s1, 4
      %s31 = int_to_ptr.hbm [resolvable:$true] %s30
      %s32 = sshll.u32 [#allocation5], 4
      %s33 = int_to_ptr.vmem [resolvable:$true] %s32
      %38 = dma.hbm_to_vmem [thread:$0]  %s31, 128, %s33, [#allocation6], 64, 64, 4
    $region9: #{tpu_custom_call.1} parent=1 // pred_fallthru
      _
    // Predicated region
    $region10: #{tpu_custom_call.1} parent=1 // pred_check
      _
    $region11: #{tpu_custom_call.1} parent=1 // pred_check_branch
      %40 = sbr.rel (0) target = $region13
    $region12: #{tpu_custom_call.1} parent=1 // pred_region
      %42 = vsyncadd [#allocation6], 0
      %s43 = sshll.u32 %s2, 4
      %s44 = int_to_ptr.hbm [resolvable:$true] %s43
      %s45 = sshll.u32 [#allocation7], 4
      %s46 = int_to_ptr.vmem [resolvable:$true] %s45
      %51 = dma.hbm_to_vmem [thread:$0]  %s44, 4096, %s46, [#allocation6], 256, 256, 16
    $region13: #{tpu_custom_call.1} parent=1 // pred_fallthru
      _
    // Predicated region
    $region14: #{tpu_custom_call.1} parent=1 // pred_check
      _
    $region15: #{tpu_custom_call.1} parent=1 // pred_check_branch
      %53 = sbr.rel (0) target = $region17
    $region16: #{tpu_custom_call.1} parent=1 // pred_region
      %55 = vsyncadd [#allocation9], 0
      %s57 = sshll.u32 %s3, 4
      %s58 = int_to_ptr.hbm [resolvable:$true] %s57
      %s59 = sshll.u32 [#allocation8], 4
      %s60 = int_to_ptr.vmem [resolvable:$true] %s59
      %62 = dma.hbm_to_vmem [thread:$0]  %s58, 64, %s60, [#allocation9]
    $region17: #{tpu_custom_call.1} parent=1 // pred_fallthru
      _
    // Predicated region
    $region18: #{tpu_custom_call.1} parent=1 // pred_check
      _
    $region19: #{tpu_custom_call.1} parent=1 // pred_check_branch
      %64 = sbr.rel (0) target = $region21
    $region20: #{tpu_custom_call.1} parent=1 // pred_region
      %66 = dma.done [#allocation3], 128
    $region21: #{tpu_custom_call.1} parent=1 // pred_fallthru
      _
    // Predicated region
    $region22: #{tpu_custom_call.1} parent=1 // pred_check
      _
    $region23: #{tpu_custom_call.1} parent=1 // pred_check_branch
      %68 = sbr.rel (0) target = $region25
    $region24: #{tpu_custom_call.1} parent=1 // pred_region
      %70 = dma.done [#allocation6], 128
    $region25: #{tpu_custom_call.1} parent=1 // pred_fallthru
      _
    // Predicated region
    $region26: #{tpu_custom_call.1} parent=1 // pred_check
      _
    $region27: #{tpu_custom_call.1} parent=1 // pred_check_branch
      %72 = sbr.rel (0) target = $region29
    $region28: #{tpu_custom_call.1} parent=1 // pred_region
      %74 = dma.done [#allocation6], 4096
    $region29: #{tpu_custom_call.1} parent=1 // pred_fallthru
      _
    // Predicated region
    $region30: #{tpu_custom_call.1} parent=1 // pred_check
      _
    $region31: #{tpu_custom_call.1} parent=1 // pred_check_branch
      %76 = sbr.rel (0) target = $region33
    $region32: #{tpu_custom_call.1} parent=1 // pred_region
      %78 = dma.done [#allocation9], 64
    $region33: #{tpu_custom_call.1} parent=1 // pred_fallthru
      _
    %v80 = vld [vmem:[#allocation2] sm:$0xf]
    %v81 = vld [vmem:[#allocation2 + $0x4] sm:$0xf]
    %v82 = vld [vmem:[#allocation5] sm:$0xf]
    %v83 = vld [vmem:[#allocation5 + $0x4] sm:$0xf]
    %v86 = vunpack.c.l.b16 %v80
    %v87 = vunpack.c.l.b16 %v81
    %v88 = vpack.c.b16 %v87, %v86
    %v91 = vunpack.c.l.b16 %v82
    %v92 = vunpack.c.l.b16 %v83
    %v93 = vpack.c.b16 %v92, %v91
    %vm95 = vcmask 130048
    %v97 = vsel %vm95, %v88, 0
    %99 = vmatpush.bf16.msra.mxu0 0
    %100 = vmatpush.bf16.msra.mxu0 0
    %101 = vmatpush.bf16.msra.mxu0 0
    %102 = vmatpush.bf16.msra.mxu0 0
    %103 = vmatpush.bf16.msra.mxu0 0
    %104 = vmatpush.bf16.msra.mxu0 0
    %105 = vmatpush.bf16.msra.mxu0 0
    %106 = vmatpush.bf16.msra.mxu0 %v93
    %107 = vmatmul.bf16.gmra.mxu0 %v97
    %v108 = vpop.f32.mrf.mxu0
    %v109 = vadd.f32 0.0, %v108
    %v110 = vpop.f32.mrf.mxu0
    %v111 = vadd.f32 0.0, %v110
    %112 = vdwg.mxu0
    %v113 = vpack.c.bf16 %v111, %v109
    %v114 = vld [vmem:[#allocation7] sm:$0xff]
    %v115 = vld [vmem:[#allocation7 + $0x8] sm:$0xff]
    %v116 = vld [vmem:[#allocation7 + $0x10] sm:$0xff]
    %v117 = vld [vmem:[#allocation7 + $0x18] sm:$0xff]
    %v118 = vld [vmem:[#allocation7 + $0x20] sm:$0xff]
    %v119 = vld [vmem:[#allocation7 + $0x28] sm:$0xff]
    %v120 = vld [vmem:[#allocation7 + $0x30] sm:$0xff]
    %v121 = vld [vmem:[#allocation7 + $0x38] sm:$0xff]
    %v122 = vld [vmem:[#allocation7 + $0x40] sm:$0xff]
    %v123 = vld [vmem:[#allocation7 + $0x48] sm:$0xff]
    %v124 = vld [vmem:[#allocation7 + $0x50] sm:$0xff]
    %v125 = vld [vmem:[#allocation7 + $0x58] sm:$0xff]
    %v126 = vld [vmem:[#allocation7 + $0x60] sm:$0xff]
    %v127 = vld [vmem:[#allocation7 + $0x68] sm:$0xff]
    %v128 = vld [vmem:[#allocation7 + $0x70] sm:$0xff]
    %v129 = vld [vmem:[#allocation7 + $0x78] sm:$0xff]
    %v130 = vld [vmem:[#allocation7 + $0x80] sm:$0xff]
    %v131 = vld [vmem:[#allocation7 + $0x88] sm:$0xff]
    %v132 = vld [vmem:[#allocation7 + $0x90] sm:$0xff]
    %v133 = vld [vmem:[#allocation7 + $0x98] sm:$0xff]
    %v134 = vld [vmem:[#allocation7 + $0xa0] sm:$0xff]
    %v135 = vld [vmem:[#allocation7 + $0xa8] sm:$0xff]
    %v136 = vld [vmem:[#allocation7 + $0xb0] sm:$0xff]
    %v137 = vld [vmem:[#allocation7 + $0xb8] sm:$0xff]
    %v138 = vld [vmem:[#allocation7 + $0xc0] sm:$0xff]
    %v139 = vld [vmem:[#allocation7 + $0xc8] sm:$0xff]
    %v140 = vld [vmem:[#allocation7 + $0xd0] sm:$0xff]
    %v141 = vld [vmem:[#allocation7 + $0xd8] sm:$0xff]
    %v142 = vld [vmem:[#allocation7 + $0xe0] sm:$0xff]
    %v143 = vld [vmem:[#allocation7 + $0xe8] sm:$0xff]
    %v144 = vld [vmem:[#allocation7 + $0xf0] sm:$0xff]
    %v145 = vld [vmem:[#allocation7 + $0xf8] sm:$0xff]
    %v146 = vld [vmem:[#allocation8] sm:$0xf]
    %v148 = vperm.slane %v146, 0
    %v149 = vperm.slane %v146, 1
    %v150 = vperm.slane %v146, 2
    %v151 = vperm.slane %v146, 3
    %v188 = vunpack.c.l.b16 %v114
    %v189 = vunpack.c.h.b16 %v114
    %v190 = vunpack.c.l.b16 %v115
    %v191 = vunpack.c.h.b16 %v115
    %v192 = vunpack.c.l.b16 %v116
    %v193 = vunpack.c.h.b16 %v116
    %v194 = vunpack.c.l.b16 %v117
    %v195 = vunpack.c.h.b16 %v117
    %v196 = vunpack.c.l.b16 %v118
    %v197 = vunpack.c.h.b16 %v118
    %v198 = vunpack.c.l.b16 %v119
    %v199 = vunpack.c.h.b16 %v119
    %v200 = vunpack.c.l.b16 %v120
    %v201 = vunpack.c.h.b16 %v120
    %v202 = vunpack.c.l.b16 %v121
    %v203 = vunpack.c.h.b16 %v121
    %v204 = vunpack.c.l.b16 %v122
    %v205 = vunpack.c.h.b16 %v122
    %v206 = vunpack.c.l.b16 %v123
    %v207 = vunpack.c.h.b16 %v123
    %v208 = vunpack.c.l.b16 %v124
    %v209 = vunpack.c.h.b16 %v124
    %v210 = vunpack.c.l.b16 %v125
    %v211 = vunpack.c.h.b16 %v125
    %v212 = vunpack.c.l.b16 %v126
    %v213 = vunpack.c.h.b16 %v126
    %v214 = vunpack.c.l.b16 %v127
    %v215 = vunpack.c.h.b16 %v127
    %v216 = vunpack.c.l.b16 %v128
    %v217 = vunpack.c.h.b16 %v128
    %v218 = vunpack.c.l.b16 %v129
    %v219 = vunpack.c.h.b16 %v129
    %v220 = vunpack.c.l.b16 %v130
    %v221 = vunpack.c.h.b16 %v130
    %v222 = vunpack.c.l.b16 %v131
    %v223 = vunpack.c.h.b16 %v131
    %v224 = vunpack.c.l.b16 %v132
    %v225 = vunpack.c.h.b16 %v132
    %v226 = vunpack.c.l.b16 %v133
    %v227 = vunpack.c.h.b16 %v133
    %v228 = vunpack.c.l.b16 %v134
    %v229 = vunpack.c.h.b16 %v134
    %v230 = vunpack.c.l.b16 %v135
    %v231 = vunpack.c.h.b16 %v135
    %v232 = vunpack.c.l.b16 %v136
    %v233 = vunpack.c.h.b16 %v136
    %v234 = vunpack.c.l.b16 %v137
    %v235 = vunpack.c.h.b16 %v137
    %v236 = vunpack.c.l.b16 %v138
    %v237 = vunpack.c.h.b16 %v138
    %v238 = vunpack.c.l.b16 %v139
    %v239 = vunpack.c.h.b16 %v139
    %v240 = vunpack.c.l.b16 %v140
    %v241 = vunpack.c.h.b16 %v140
    %v242 = vunpack.c.l.b16 %v141
    %v243 = vunpack.c.h.b16 %v141
    %v244 = vunpack.c.l.b16 %v142
    %v245 = vunpack.c.h.b16 %v142
    %v246 = vunpack.c.l.b16 %v143
    %v247 = vunpack.c.h.b16 %v143
    %v248 = vunpack.c.l.b16 %v144
    %v249 = vunpack.c.h.b16 %v144
    %v250 = vunpack.c.l.b16 %v145
    %v251 = vunpack.c.h.b16 %v145
    %v252 = vpack.c.b16 %v192, %v188
    %v253 = vpack.c.b16 %v193, %v189
    %v254 = vpack.c.b16 %v194, %v190
    %v255 = vpack.c.b16 %v195, %v191
    %v256 = vpack.c.b16 %v200, %v196
    %v257 = vpack.c.b16 %v201, %v197
    %v258 = vpack.c.b16 %v202, %v198
    %v259 = vpack.c.b16 %v203, %v199
    %v260 = vpack.c.b16 %v208, %v204
    %v261 = vpack.c.b16 %v209, %v205
    %v262 = vpack.c.b16 %v210, %v206
    %v263 = vpack.c.b16 %v211, %v207
    %v264 = vpack.c.b16 %v216, %v212
    %v265 = vpack.c.b16 %v217, %v213
    %v266 = vpack.c.b16 %v218, %v214
    %v267 = vpack.c.b16 %v219, %v215
    %v268 = vpack.c.b16 %v224, %v220
    %v269 = vpack.c.b16 %v225, %v221
    %v270 = vpack.c.b16 %v226, %v222
    %v271 = vpack.c.b16 %v227, %v223
    %v272 = vpack.c.b16 %v232, %v228
    %v273 = vpack.c.b16 %v233, %v229
    %v274 = vpack.c.b16 %v234, %v230
    %v275 = vpack.c.b16 %v235, %v231
    %v276 = vpack.c.b16 %v240, %v236
    %v277 = vpack.c.b16 %v241, %v237
    %v278 = vpack.c.b16 %v242, %v238
    %v279 = vpack.c.b16 %v243, %v239
    %v280 = vpack.c.b16 %v248, %v244
    %v281 = vpack.c.b16 %v249, %v245
    %v282 = vpack.c.b16 %v250, %v246
    %v283 = vpack.c.b16 %v251, %v247
    %316 = vmatpush.bf16.msra.mxu0 %v280
    %317 = vmatpush.bf16.msra.mxu0 %v276
    %318 = vmatpush.bf16.msra.mxu0 %v272
    %319 = vmatpush.bf16.msra.mxu0 %v268
    %320 = vmatpush.bf16.msra.mxu0 %v264
    %321 = vmatpush.bf16.msra.mxu0 %v260
    %322 = vmatpush.bf16.msra.mxu0 %v256
    %323 = vmatpush.bf16.msra.mxu0 %v252
    %324 = vmatmul.bf16.gmra.mxu0 %v113
    %v325 = vpop.f32.mrf.mxu0
    %v326 = vadd.f32 %v148, %v325
    %v327 = vpop.f32.mrf.mxu0
    %v328 = vadd.f32 %v148, %v327
    %329 = vdwg.mxu0
    %330 = vmatpush.bf16.msra.mxu0 %v281
    %331 = vmatpush.bf16.msra.mxu0 %v277
    %332 = vmatpush.bf16.msra.mxu0 %v273
    %333 = vmatpush.bf16.msra.mxu0 %v269
    %334 = vmatpush.bf16.msra.mxu0 %v265
    %335 = vmatpush.bf16.msra.mxu0 %v261
    %336 = vmatpush.bf16.msra.mxu0 %v257
    %337 = vmatpush.bf16.msra.mxu0 %v253
    %338 = vmatmul.bf16.gmra.mxu0 %v113
    %v339 = vpop.f32.mrf.mxu0
    %v340 = vadd.f32 %v149, %v339
    %v341 = vpop.f32.mrf.mxu0
    %v342 = vadd.f32 %v149, %v341
    %343 = vdwg.mxu0
    %344 = vmatpush.bf16.msra.mxu0 %v282
    %345 = vmatpush.bf16.msra.mxu0 %v278
    %346 = vmatpush.bf16.msra.mxu0 %v274
    %347 = vmatpush.bf16.msra.mxu0 %v270
    %348 = vmatpush.bf16.msra.mxu0 %v266
    %349 = vmatpush.bf16.msra.mxu0 %v262
    %350 = vmatpush.bf16.msra.mxu0 %v258
    %351 = vmatpush.bf16.msra.mxu0 %v254
    %352 = vmatmul.bf16.gmra.mxu0 %v113
    %v353 = vpop.f32.mrf.mxu0
    %v354 = vadd.f32 %v150, %v353
    %v355 = vpop.f32.mrf.mxu0
    %v356 = vadd.f32 %v150, %v355
    %357 = vdwg.mxu0
    %358 = vmatpush.bf16.msra.mxu0 %v283
    %359 = vmatpush.bf16.msra.mxu0 %v279
    %360 = vmatpush.bf16.msra.mxu0 %v275
    %361 = vmatpush.bf16.msra.mxu0 %v271
    %362 = vmatpush.bf16.msra.mxu0 %v267
    %363 = vmatpush.bf16.msra.mxu0 %v263
    %364 = vmatpush.bf16.msra.mxu0 %v259
    %365 = vmatpush.bf16.msra.mxu0 %v255
    %366 = vmatmul.bf16.gmra.mxu0 %v113
    %v367 = vpop.f32.mrf.mxu0
    %v368 = vadd.f32 %v151, %v367
    %v369 = vpop.f32.mrf.mxu0
    %v370 = vadd.f32 %v151, %v369
    %371 = vdwg.mxu0
    %vm372 = vcmp.gt.f32.partialorder %v326, 0.0
    %vm373 = vcmp.gt.f32.partialorder %v340, 0.0
    %vm374 = vcmp.gt.f32.partialorder %v354, 0.0
    %vm375 = vcmp.gt.f32.partialorder %v368, 0.0
    %vm376 = vcmp.gt.f32.partialorder %v328, 0.0
    %vm377 = vcmp.gt.f32.partialorder %v342, 0.0
    %vm378 = vcmp.gt.f32.partialorder %v356, 0.0
    %vm379 = vcmp.gt.f32.partialorder %v370, 0.0
    %v380 = vmul.f32 %v326, 0.01
    %v381 = vmul.f32 %v340, 0.01
    %v382 = vmul.f32 %v354, 0.01
    %v383 = vmul.f32 %v368, 0.01
    %v384 = vmul.f32 %v328, 0.01
    %v385 = vmul.f32 %v342, 0.01
    %v386 = vmul.f32 %v356, 0.01
    %v387 = vmul.f32 %v370, 0.01
    %v388 = vsel %vm372, %v326, %v380
    %v389 = vsel %vm373, %v340, %v381
    %v390 = vsel %vm374, %v354, %v382
    %v391 = vsel %vm375, %v368, %v383
    %v392 = vsel %vm376, %v328, %v384
    %v393 = vsel %vm377, %v342, %v385
    %v394 = vsel %vm378, %v356, %v386
    %v395 = vsel %vm379, %v370, %v387
    %v396 = vpack.c.bf16 %v389, %v388
    %v397 = vpack.c.bf16 %v391, %v390
    %v398 = vpack.c.bf16 %v393, %v392
    %v399 = vpack.c.bf16 %v395, %v394
    %400 = vst [vmem:[#allocation10] sm:$0xff] %v396
    %401 = vst [vmem:[#allocation10 + $0x8] sm:$0xff] %v397
    %402 = vst [vmem:[#allocation10 + $0x10] sm:$0xff] %v398
    %403 = vst [vmem:[#allocation10 + $0x18] sm:$0xff] %v399
    // Predicated region
    $region34: #{tpu_custom_call.1} parent=1 // pred_check
      _
    $region35: #{tpu_custom_call.1} parent=1 // pred_check_branch
      %405 = sbr.rel (0) target = $region37
    $region36: #{tpu_custom_call.1} parent=1 // pred_region
      %407 = vsyncadd [#allocation4], 0
      %s408 = sshll.u32 [#allocation10], 4
      %s409 = int_to_ptr.vmem [resolvable:$true] %s408
      %s410 = sshll.u32 %s4, 4
      %s411 = int_to_ptr.hbm [resolvable:$true] %s410
      %416 = dma.vmem_to_hbm [thread:$0]  %s409, 512, %s411, [#allocation4], 256, 256, 16
    $region37: #{tpu_custom_call.1} parent=1 // pred_fallthru
      _
    // Predicated region
    $region38: #{tpu_custom_call.1} parent=1 // pred_check
      _
    $region39: #{tpu_custom_call.1} parent=1 // pred_check_branch
      %418 = sbr.rel (0) target = $region41
    $region40: #{tpu_custom_call.1} parent=1 // pred_region
      %420 = dma.done [#allocation4], 512
    $region41: #{tpu_custom_call.1} parent=1 // pred_fallthru
      _
    %421 = vsyncpa [#allocation3], 1
    %422 = vsyncpa [#allocation6], 1
    %423 = vsyncpa [#allocation9], 1
    %424 = vsyncpa [#allocation4], 1

</llo_original>
